<compile_context>
chip_gen: v7x
topology: tpu7x:2x2x1
jax: 0.10.0
libtpu: 0.0.40
codegen_flags: <defaults>
</compile_context>

<pallas_src>
import math
import functools

import jax
import jax.numpy as jnp
from jax.experimental import pallas as pl
from jax.experimental.pallas import tpu as pltpu


# -----------------------------------------------------------------------------
# Kernel: grid = (batch, query-tile).  QKV is projected once per batch element
# (t == 0) into head-major VMEM scratch; every grid step does attention for one
# query tile against the cached full-sequence K/V.
# -----------------------------------------------------------------------------
def bert_self_attention_kernel(
    x_ref, mask_ref, wqkv_ref, bqkv_ref,   # inputs
    out_ref,                               # output
    q_scr, k_scr, v_scr,                   # VMEM scratch (NH, S, d) bf16
    *, num_heads, head_dim, q_tile,
):
    H = num_heads * head_dim
    S = x_ref.shape[1]
    t = pl.program_id(1)
    f32 = jnp.float32
    bf16 = jnp.bfloat16

    # --- once per batch element: fused QKV projection, cached head-major ---
    @pl.when(t == 0)
    def _():
        xf = x_ref[0].astype(bf16)                                   # (S, H)
        qkv = jnp.dot(xf, wqkv_ref[...], preferred_element_type=f32)  # (S, 3H) f32 acc
        qkv = (qkv + bqkv_ref[...]).astype(bf16)
        q = qkv[:, 0 * H:1 * H].reshape(S, num_heads, head_dim)
        k = qkv[:, 1 * H:2 * H].reshape(S, num_heads, head_dim)
        v = qkv[:, 2 * H:3 * H].reshape(S, num_heads, head_dim)
        q_scr[...] = jnp.transpose(q, (1, 0, 2))                      # (NH, S, d)
        k_scr[...] = jnp.transpose(k, (1, 0, 2))
        v_scr[...] = jnp.transpose(v, (1, 0, 2))

    # --- attention for this query tile (batched over heads, no per-head loop) ---
    row0 = pl.multiple_of(t * q_tile, q_tile)
    qh = q_scr[:, pl.ds(row0, q_tile), :]                             # (NH, TQ, d)
    kh = k_scr[...]                                                   # (NH, S, d)
    vh = v_scr[...]                                                   # (NH, S, d)

    scores = jnp.einsum("hqd,hkd->hqk", qh, kh, preferred_element_type=f32)
    scores = scores * (1.0 / math.sqrt(head_dim)) + mask_ref[0]       # + (1, S) additive mask

    m = jnp.max(scores, axis=-1, keepdims=True)
    e = jnp.exp(scores - m)
    denom = jnp.sum(e, axis=-1, keepdims=True)
    probs = e * pl.reciprocal(denom, approx=True)
    # TODO(synk): attention_probs dropout and optional head_mask skipped (inference / None)

    ctx = jnp.einsum("hqk,hkd->hqd", probs.astype(bf16), vh,
                     preferred_element_type=f32)                      # (NH, TQ, d)
    out = jnp.transpose(ctx, (1, 0, 2)).reshape(q_tile, H)            # merge heads
    out_ref[0] = out.astype(out_ref.dtype)


# -----------------------------------------------------------------------------
# Wrapper
# -----------------------------------------------------------------------------
def _pick_q_tile(S):
    for tq in (512, 256, 128, 64, 32, 16, 8):
        if tq <= S and S % tq == 0:
            return tq
    return S


def bert_self_attention(hidden_states, attention_mask, params, *, num_heads):
    """hidden_states: (B, S, H) f32; attention_mask: (B, 1, 1, S) additive."""
    B, S, H = hidden_states.shape
    head_dim = H // num_heads
    TQ = _pick_q_tile(S)

    mask3 = attention_mask.reshape(B, 1, S).astype(jnp.float32)
    # fused QKV weight (H, 3H) in bf16; biases kept f32 (added post-accumulation)
    wqkv = jnp.concatenate([params["wq"], params["wk"], params["wv"]],
                           axis=1).astype(jnp.bfloat16)
    bqkv = jnp.concatenate([params["bq"], params["bk"], params["bv"]],
                           axis=1).astype(jnp.float32)

    kern = functools.partial(
        bert_self_attention_kernel,
        num_heads=num_heads, head_dim=head_dim, q_tile=TQ,
    )

    grid_spec = pltpu.PrefetchScalarGridSpec(
        num_scalar_prefetch=0,
        grid=(B, S // TQ),
        in_specs=[
            pl.BlockSpec((1, S, H), lambda b, t: (b, 0, 0)),      # hidden_states (full seq)
            pl.BlockSpec((1, 1, S), lambda b, t: (b, 0, 0)),      # additive mask
            pl.BlockSpec((H, 3 * H), lambda b, t: (0, 0)),        # fused QKV weight (bf16)
            pl.BlockSpec((1, 3 * H), lambda b, t: (0, 0)),        # fused QKV bias (f32)
        ],
        out_specs=pl.BlockSpec((1, TQ, H), lambda b, t: (b, t, 0)),
        scratch_shapes=[
            pltpu.VMEM((num_heads, S, head_dim), jnp.bfloat16),   # Q cache
            pltpu.VMEM((num_heads, S, head_dim), jnp.bfloat16),   # K cache
            pltpu.VMEM((num_heads, S, head_dim), jnp.bfloat16),   # V cache
        ],
    )

    return pl.pallas_call(
        kern,
        out_shape=jax.ShapeDtypeStruct((B, S, H), jnp.float32),
        grid_spec=grid_spec,
        compiler_params=pltpu.CompilerParams(
            # batch axis megacore-parallel; query-tile axis sequential (carries the
            # per-batch Q/K/V scratch cache)
            dimension_semantics=("parallel", "arbitrary"),
            vmem_limit_bytes=48 * 1024 * 1024,
        ),
    )(hidden_states, mask3, wqkv, bqkv)


# -----------------------------------------------------------------------------
# Pure-JAX reference (mirrors torch BertSelfAttention.forward, dropout identity)
# -----------------------------------------------------------------------------
def bert_self_attention_ref(x, attention_mask, p, *, num_heads):
    B, S, H = x.shape
    d = H // num_heads
    q = x @ p["wq"] + p["bq"]
    k = x @ p["wk"] + p["bk"]
    v = x @ p["wv"] + p["bv"]
    q = q.reshape(B, S, num_heads, d).transpose(0, 2, 1, 3)
    k = k.reshape(B, S, num_heads, d).transpose(0, 2, 1, 3)
    v = v.reshape(B, S, num_heads, d).transpose(0, 2, 1, 3)
    scores = jnp.einsum("bhqd,bhkd->bhqk", q, k) / math.sqrt(d)
    scores = scores + attention_mask          # (B,1,1,S) broadcast
    probs = jax.nn.softmax(scores, axis=-1)
    ctx = jnp.einsum("bhqk,bhkd->bhqd", probs, v)
    return ctx.transpose(0, 2, 1, 3).reshape(B, S, H)


# -----------------------------------------------------------------------------
# Main
# -----------------------------------------------------------------------------
if __name__ == "__main__":
    B, S, H, NH = 2, 8, 32, 4

    key = jax.random.PRNGKey(0)
    keys = jax.random.split(key, 8)
    init = lambda k, shape: (0.02 * jax.random.normal(k, shape)).astype(jnp.float32)

    params = {
        "wq": init(keys[0], (H, H)), "bq": init(keys[1], (1, H)),
        "wk": init(keys[2], (H, H)), "bk": init(keys[3], (1, H)),
        "wv": init(keys[4], (H, H)), "bv": init(keys[5], (1, H)),
    }

    x = jax.random.normal(keys[6], (B, S, H), dtype=jnp.float32)
    # additive BERT mask: last two key positions of batch 1 masked out
    keep = jnp.ones((B, S), jnp.float32).at[1, -2:].set(0.0)
    attention_mask = ((1.0 - keep) * -10000.0).reshape(B, 1, 1, S)

    out = bert_self_attention(x, attention_mask, params, num_heads=NH)
    out = jax.block_until_ready(out)

    ref = bert_self_attention_ref(x, attention_mask, params, num_heads=NH)
    # bf16 matmul inputs + approx reciprocal => slightly relaxed tolerance vs f32 ref
    assert jnp.allclose(out, ref, atol=3e-3, rtol=3e-3), "mismatch vs reference"

    print("KERNEL_OK")
</pallas_src>

<mosaic_0001>
module attributes {stable_mosaic.version = 11 : i64} {
  func.func @bert_self_attention_kernel(%arg0: i32, %arg1: i32, %arg2: memref<1x8x32xf32, #tpu.memory_space<vmem>>, %arg3: memref<1x1x8xf32, #tpu.memory_space<vmem>>, %arg4: memref<32x96xbf16, #tpu.memory_space<vmem>>, %arg5: memref<1x96xf32, #tpu.memory_space<vmem>>, %arg6: memref<1x8x32xf32, #tpu.memory_space<vmem>>, %arg7: memref<4x8x8xbf16, #tpu.memory_space<vmem>>, %arg8: memref<4x8x8xbf16, #tpu.memory_space<vmem>>, %arg9: memref<4x8x8xbf16, #tpu.memory_space<vmem>>) attributes {dimension_semantics = [#tpu.dimension_semantics<parallel>, #tpu.dimension_semantics<arbitrary>], iteration_bounds = array<i64: 2, 1>, scalar_prefetch = 0 : i64, scratch_operands = 3 : i64, tpu.core_type = #tpu.core_type<tc>, window_params = [{transform_indices = @transform_0, window_bounds = array<i64: 1, 8, 32>}, {transform_indices = @transform_1, window_bounds = array<i64: 1, 1, 8>}, {pipeline_mode = #tpu.pipeline_mode<synchronous>, transform_indices = @transform_2, window_bounds = array<i64: 32, 96>}, {pipeline_mode = #tpu.pipeline_mode<synchronous>, transform_indices = @transform_3, window_bounds = array<i64: 1, 96>}, {transform_indices = @transform_4, window_bounds = array<i64: 1, 8, 32>}]} {
    %c0_i32 = arith.constant 0 : i32
    %0 = arith.cmpi eq, %arg1, %c0_i32 : i32
    %1 = arith.extui %0 : i1 to i32
    %c0_i32_0 = arith.constant 0 : i32
    %2 = arith.cmpi ne, %1, %c0_i32_0 : i32
    scf.if %2 {
      %c0_18 = arith.constant 0 : index
      %c0_19 = arith.constant 0 : index
      %c0_20 = arith.constant 0 : index
      %34 = vector.load %arg2[%c0_18, %c0_19, %c0_20] : memref<1x8x32xf32, #tpu.memory_space<vmem>>, vector<1x8x32xf32>
      %35 = vector.shape_cast %34 : vector<1x8x32xf32> to vector<8x32xf32>
      %36 = arith.truncf %35 : vector<8x32xf32> to vector<8x32xbf16>
      %c0_21 = arith.constant 0 : index
      %c0_22 = arith.constant 0 : index
      %37 = vector.load %arg4[%c0_21, %c0_22] : memref<32x96xbf16, #tpu.memory_space<vmem>>, vector<32x96xbf16>
      %cst_23 = arith.constant dense<0.000000e+00> : vector<8x96xf32>
      %38 = tpu.matmul %36, %37, %cst_23 {dimension_numbers = #tpu.dot_dimension_numbers<[1], [0], [0], [1], [0, 0, 1, 1], [], []>} : vector<8x32xbf16>, vector<32x96xbf16>, vector<8x96xf32> -> vector<8x96xf32>
      %c0_24 = arith.constant 0 : index
      %c0_25 = arith.constant 0 : index
      %39 = vector.load %arg5[%c0_24, %c0_25] : memref<1x96xf32, #tpu.memory_space<vmem>>, vector<1x96xf32>
      %40 = vector.broadcast %39 : vector<1x96xf32> to vector<8x96xf32>
      %41 = arith.addf %38, %40 : vector<8x96xf32>
      %42 = arith.truncf %41 : vector<8x96xf32> to vector<8x96xbf16>
      %43 = vector.extract_strided_slice %42 {offsets = [0, 0], sizes = [8, 32], strides = [1, 1]} : vector<8x96xbf16> to vector<8x32xbf16>
      %44 = vector.shape_cast %43 : vector<8x32xbf16> to vector<8x4x8xbf16>
      %45 = vector.extract_strided_slice %42 {offsets = [0, 32], sizes = [8, 32], strides = [1, 1]} : vector<8x96xbf16> to vector<8x32xbf16>
      %46 = vector.shape_cast %45 : vector<8x32xbf16> to vector<8x4x8xbf16>
      %47 = vector.extract_strided_slice %42 {offsets = [0, 64], sizes = [8, 32], strides = [1, 1]} : vector<8x96xbf16> to vector<8x32xbf16>
      %48 = vector.shape_cast %47 : vector<8x32xbf16> to vector<8x4x8xbf16>
      %49 = tpu.transpose %44, [1, 0, 2] : vector<8x4x8xbf16> -> vector<4x8x8xbf16>
      %c0_26 = arith.constant 0 : index
      %c0_27 = arith.constant 0 : index
      %c0_28 = arith.constant 0 : index
      %50 = vector.load %arg7[%c0_26, %c0_27, %c0_28] : memref<4x8x8xbf16, #tpu.memory_space<vmem>>, vector<4x8x8xbf16>
      tpu.vector_store %arg7[%c0_26, %c0_27, %c0_28], %49 {strides = array<i32>} : memref<4x8x8xbf16, #tpu.memory_space<vmem>>, vector<4x8x8xbf16>,
      %51 = tpu.transpose %46, [1, 0, 2] : vector<8x4x8xbf16> -> vector<4x8x8xbf16>
      %c0_29 = arith.constant 0 : index
      %c0_30 = arith.constant 0 : index
      %c0_31 = arith.constant 0 : index
      %52 = vector.load %arg8[%c0_29, %c0_30, %c0_31] : memref<4x8x8xbf16, #tpu.memory_space<vmem>>, vector<4x8x8xbf16>
      tpu.vector_store %arg8[%c0_29, %c0_30, %c0_31], %51 {strides = array<i32>} : memref<4x8x8xbf16, #tpu.memory_space<vmem>>, vector<4x8x8xbf16>,
      %53 = tpu.transpose %48, [1, 0, 2] : vector<8x4x8xbf16> -> vector<4x8x8xbf16>
      %c0_32 = arith.constant 0 : index
      %c0_33 = arith.constant 0 : index
      %c0_34 = arith.constant 0 : index
      %54 = vector.load %arg9[%c0_32, %c0_33, %c0_34] : memref<4x8x8xbf16, #tpu.memory_space<vmem>>, vector<4x8x8xbf16>
      tpu.vector_store %arg9[%c0_32, %c0_33, %c0_34], %53 {strides = array<i32>} : memref<4x8x8xbf16, #tpu.memory_space<vmem>>, vector<4x8x8xbf16>,
    } else {
    }
    %c8_i32 = arith.constant 8 : i32
    %3 = arith.muli %arg1, %c8_i32 : i32
    %4 = tpu.assume_multiple %3, 8 : i32
    %c0 = arith.constant 0 : index
    %5 = arith.index_cast %4 : i32 to index
    %c0_1 = arith.constant 0 : index
    %6 = vector.load %arg7[%c0, %5, %c0_1] : memref<4x8x8xbf16, #tpu.memory_space<vmem>>, vector<4x8x8xbf16>
    %c0_2 = arith.constant 0 : index
    %c0_3 = arith.constant 0 : index
    %c0_4 = arith.constant 0 : index
    %7 = vector.load %arg8[%c0_2, %c0_3, %c0_4] : memref<4x8x8xbf16, #tpu.memory_space<vmem>>, vector<4x8x8xbf16>
    %c0_5 = arith.constant 0 : index
    %c0_6 = arith.constant 0 : index
    %c0_7 = arith.constant 0 : index
    %8 = vector.load %arg9[%c0_5, %c0_6, %c0_7] : memref<4x8x8xbf16, #tpu.memory_space<vmem>>, vector<4x8x8xbf16>
    "tpu.trace_start"() <{level = 10 : i32, message = "hqd,hkd->hqk"}> : () -> ()
    %cst = arith.constant dense<0.000000e+00> : vector<4x8x8xf32>
    %9 = tpu.matmul %6, %7, %cst {dimension_numbers = #tpu.dot_dimension_numbers<[2], [2], [1], [1], [0, 0, 0, 1, 1, 1], [0], [0]>} : vector<4x8x8xbf16>, vector<4x8x8xbf16>, vector<4x8x8xf32> -> vector<4x8x8xf32>
    "tpu.trace_stop"() : () -> ()
    %cst_8 = arith.constant 0.353553385 : f32
    %10 = vector.broadcast %cst_8 : f32 to vector<4x8x8xf32>
    %11 = arith.mulf %9, %10 : vector<4x8x8xf32>
    %c0_9 = arith.constant 0 : index
    %c0_10 = arith.constant 0 : index
    %c0_11 = arith.constant 0 : index
    %12 = vector.load %arg3[%c0_9, %c0_10, %c0_11] : memref<1x1x8xf32, #tpu.memory_space<vmem>>, vector<1x1x8xf32>
    %13 = vector.shape_cast %12 : vector<1x1x8xf32> to vector<1x8xf32>
    %14 = vector.shape_cast %13 : vector<1x8xf32> to vector<1x1x8xf32>
    %15 = vector.broadcast %14 : vector<1x1x8xf32> to vector<4x8x8xf32>
    %16 = arith.addf %11, %15 : vector<4x8x8xf32>
    %cst_12 = arith.constant dense<0xFF800000> : vector<4x8xf32>
    %17 = vector.multi_reduction <maximumf>, %16, %cst_12 [2] : vector<4x8x8xf32> to vector<4x8xf32>
    %18 = vector.shape_cast %17 : vector<4x8xf32> to vector<4x8x1xf32>
    %19 = vector.broadcast %18 : vector<4x8x1xf32> to vector<4x8x8xf32>
    %20 = arith.subf %16, %19 : vector<4x8x8xf32>
    %21 = math.exp %20 : vector<4x8x8xf32>
    %cst_13 = arith.constant dense<0.000000e+00> : vector<4x8xf32>
    %22 = vector.multi_reduction <add>, %21, %cst_13 [2] : vector<4x8x8xf32> to vector<4x8xf32>
    %23 = vector.shape_cast %22 : vector<4x8xf32> to vector<4x8x1xf32>
    %24 = tpu.reciprocal %23 {approx = true} : vector<4x8x1xf32> -> vector<4x8x1xf32>
    %25 = vector.broadcast %24 : vector<4x8x1xf32> to vector<4x8x8xf32>
    %26 = arith.mulf %21, %25 : vector<4x8x8xf32>
    %27 = arith.truncf %26 : vector<4x8x8xf32> to vector<4x8x8xbf16>
    "tpu.trace_start"() <{level = 10 : i32, message = "hqk,hkd->hqd"}> : () -> ()
    %cst_14 = arith.constant dense<0.000000e+00> : vector<4x8x8xf32>
    %28 = tpu.matmul %27, %8, %cst_14 {dimension_numbers = #tpu.dot_dimension_numbers<[2], [1], [1], [2], [0, 0, 0, 1, 1, 2], [0], [0]>} : vector<4x8x8xbf16>, vector<4x8x8xbf16>, vector<4x8x8xf32> -> vector<4x8x8xf32>
    "tpu.trace_stop"() : () -> ()
    %29 = tpu.transpose %28, [1, 0, 2] : vector<4x8x8xf32> -> vector<8x4x8xf32>
    %30 = vector.shape_cast %29 : vector<8x4x8xf32> to vector<8x32xf32>
    %c0_15 = arith.constant 0 : index
    %c0_16 = arith.constant 0 : index
    %c0_17 = arith.constant 0 : index
    %31 = vector.load %arg6[%c0_15, %c0_16, %c0_17] : memref<1x8x32xf32, #tpu.memory_space<vmem>>, vector<1x8x32xf32>
    %32 = vector.shape_cast %31 : vector<1x8x32xf32> to vector<8x32xf32>
    %33 = vector.shape_cast %30 : vector<8x32xf32> to vector<1x8x32xf32>
    tpu.vector_store %arg6[%c0_15, %c0_16, %c0_17], %33 {strides = array<i32>} : memref<1x8x32xf32, #tpu.memory_space<vmem>>, vector<1x8x32xf32>,
    return
  }
  func.func @transform_0(%arg0: i32, %arg1: i32) -> (i32, i32, i32) {
    %c0_i32 = arith.constant 0 : i32
    %c0_i32_0 = arith.constant 0 : i32
    %c0_i32_1 = arith.constant 0 : i32
    return %arg0, %c0_i32, %c0_i32_0 : i32, i32, i32
  }
  func.func @transform_1(%arg0: i32, %arg1: i32) -> (i32, i32, i32) {
    %c0_i32 = arith.constant 0 : i32
    %c0_i32_0 = arith.constant 0 : i32
    %c0_i32_1 = arith.constant 0 : i32
    return %arg0, %c0_i32, %c0_i32_0 : i32, i32, i32
  }
  func.func @transform_2(%arg0: i32, %arg1: i32) -> (i32, i32) {
    %c0_i32 = arith.constant 0 : i32
    %c0_i32_0 = arith.constant 0 : i32
    %c0_i32_1 = arith.constant 0 : i32
    return %c0_i32, %c0_i32_0 : i32, i32
  }
  func.func @transform_3(%arg0: i32, %arg1: i32) -> (i32, i32) {
    %c0_i32 = arith.constant 0 : i32
    %c0_i32_0 = arith.constant 0 : i32
    %c0_i32_1 = arith.constant 0 : i32
    return %c0_i32, %c0_i32_0 : i32, i32
  }
  func.func @transform_4(%arg0: i32, %arg1: i32) -> (i32, i32, i32) {
    %c0_i32 = arith.constant 0 : i32
    %c0_i32_0 = arith.constant 0 : i32
    return %arg0, %arg1, %c0_i32 : i32, i32, i32
  }
}

</mosaic_0001>

<llo_original>
// kernel: tpu_custom_call.1
$region0: #{tpu_custom_call.1}
  #allocation0 [shape = 'u32[]', space=smem, size = 0x4, offset = 0x4, fixed_abs, tag = 'smem constant byte address 0x4 - core index']
  #allocation1 [shape = 'u32[144,128]{1,0:T(1,128)}', space=vmem, size = 0x12000, scoped, tag = 'internal scratch']
  #allocation2 [shape = 'bf16[4,8,8]{2,1,0:T(8,128)(2,1)}', space=vmem, size = 0x2000, scoped, tag = 'scratch operand']
  #allocation3 [shape = 'bf16[4,8,8]{2,1,0:T(8,128)(2,1)}', space=vmem, size = 0x2000, scoped, tag = 'scratch operand']
  #allocation4 [shape = 'bf16[4,8,8]{2,1,0:T(8,128)(2,1)}', space=vmem, size = 0x2000, scoped, tag = 'scratch operand']
  %s0 = inlined_call_operand.hbm [shape: f32[2,8,32], index: 0, kind: input, shape index: {}]
  %s1 = inlined_call_operand.vmem [shape: f32[2,1,8], index: 1, kind: input, shape index: {}]
  %s2 = inlined_call_operand.hbm [shape: bf16[32,96], index: 2, kind: input, shape index: {}]
  %s3 = inlined_call_operand.vmem [shape: f32[1,96], index: 3, kind: input, shape index: {}]
  %s4 = inlined_call_operand.hbm [shape: f32[2,8,32], index: 4, kind: output, shape index: {}]
  %s5 = sld [smem:[#allocation0]]
  $region61: #{tpu_custom_call.1} parent=0
    _
  %s7 = ssub.s32 1, %s5
  %s8 = scalar_select 0, %s7, %s5
  $region1: #{tpu_custom_call.1} parent=0
    #allocation5 [shape = 'u8[8192]{0}', space=vmem, size = 0x2000, scoped, tag = 'input window, operand 0']
    #allocation6 [shape = 's32[2]{0}', space=sflag, size = 0x8, scoped, tag = 'scoped memory for tpu_custom_call.1']
    #allocation7 [shape = 's32[2]{0}', space=sflag, size = 0x8, scoped, tag = 'scoped memory for tpu_custom_call.1']
    #allocation8 [shape = 'u8[8192]{0}', space=vmem, size = 0x2000, scoped, tag = 'input window, operand 2, single buffered']
    #allocation9 [shape = 's32[1]{0}', space=sflag, size = 0x4, scoped, tag = 'scoped memory for tpu_custom_call.1']
    #allocation10 [shape = 'u8[8192]{0}', space=vmem, size = 0x2000, scoped, tag = 'output window, operand 0']
    %9 = vsyncpa [#allocation6], 0
    %s10 = scalar_lea.sflag [#allocation6], 1
    %11 = vsyncpa %s10, 0
    %12 = vsyncpa [#allocation9], 0
    %13 = vsyncpa [#allocation7], 0
    %s14 = scalar_lea.sflag [#allocation7], 1
    %15 = vsyncpa %s14, 0
    loop: start=0, step=1, limit=4
    $region2: #{tpu_custom_call.1} parent=1 // loop_pre_header
      _
    $region3: #{tpu_custom_call.1} parent=1 // loop_header
      %s17 = sphi 0, %s21
      %p18 = scmp.ge.s32.totalorder %s17, 4
      %s24 = sphi 0, %s36
      %s25 = sphi 0, %s32
      %s26 = sphi 0, %s24
      %s27 = sphi 0, %s25
      %s28 = sphi 0, %s26
      %s29 = sphi 0, %s27
      %s39 = sphi 0, %s41
      %s42 = sphi 0, %s39
      %s43 = sphi 0, %s42
      %s59 = sphi 0, %s43
      %s65 = sphi 0, %s67
      %s68 = sphi 0, %s65
      %s69 = sphi 0, %s68
      %s85 = sphi 0, %s69
      %s89 = sphi 0, %s89
      %s91 = sphi 0, %s89
      %s92 = sphi 0, %s91
      %s106 = sphi 0, %s92
      %s110 = sphi 0, %s110
      %s112 = sphi 0, %s110
      %s113 = sphi 0, %s112
      %s127 = sphi 0, %s113
      %s135 = sphi 0, %s137
      %s138 = sphi 0, %s135
      %s139 = sphi 0, %s138
      %s155 = sphi 0, %s139
    $region4: #{tpu_custom_call.1} parent=1 // loop_header_branch
      %20 = sbr.rel (%p18) target = $region8
    $region5: #{tpu_custom_call.1} parent=1 // loop_body
      %s22 = ssub.s32 %s17, 1
      %s23 = ssub.s32 %s17, 2
      %s30 = sadd.s32 1, %s25
      %p31 = scmp.ge.s32.totalorder %s30, 1
      %s32 = scalar_select %p31, 0, %s30
      %s33 = sadd.s32 1, %s24
      %s34 = scalar_select %p31, %s33, %s24
      %p35 = scmp.ge.s32.totalorder %s34, 2
      %s36 = scalar_select %p35, 0, %s34
      %s37 = ssub.s32 %s24, %s36
      %p38 = scmp.eq.s32.totalorder %s37, 0
      %s40 = sadd.s32 %s39, 1
      %s41 = scalar_select %p38, %s39, %s40
      %p44 = pneg %p38
      %p45 = scmp.eq.s32.totalorder %s17, 1
      %p46 = por %p44, %p45
      %p47 = scmp.ne.s32.totalorder %s39, %s42
      %p48 = scmp.eq.s32.totalorder %s17, 0
      %p49 = por %p47, %p48
      %p50 = scmp.ne.s32.totalorder %s39, %s42
      %p51 = scmp.eq.s32.totalorder %s22, 1
      %p52 = por %p50, %p51
      %p53 = scmp.ne.s32.totalorder %s42, %s43
      %p54 = scmp.eq.s32.totalorder %s22, 0
      %p55 = por %p53, %p54
      %p56 = scmp.ne.s32.totalorder %s42, %s43
      %p57 = scmp.eq.s32.totalorder %s23, 1
      %p58 = por %p56, %p57
      %p60 = scmp.ne.s32.totalorder %s43, %s59
      %p61 = scmp.eq.s32.totalorder %s23, 0
      %p62 = por %p60, %p61
      %s63 = ssub.s32 %s24, %s36
      %p64 = scmp.eq.s32.totalorder %s63, 0
      %s66 = sadd.s32 %s65, 1
      %s67 = scalar_select %p64, %s65, %s66
      %p70 = pneg %p64
      %p71 = scmp.eq.s32.totalorder %s17, 1
      %p72 = por %p70, %p71
      %p73 = scmp.ne.s32.totalorder %s65, %s68
      %p74 = scmp.eq.s32.totalorder %s17, 0
      %p75 = por %p73, %p74
      %p76 = scmp.ne.s32.totalorder %s65, %s68
      %p77 = scmp.eq.s32.totalorder %s22, 1
      %p78 = por %p76, %p77
      %p79 = scmp.ne.s32.totalorder %s68, %s69
      %p80 = scmp.eq.s32.totalorder %s22, 0
      %p81 = por %p79, %p80
      %p82 = scmp.ne.s32.totalorder %s68, %s69
      %p83 = scmp.eq.s32.totalorder %s23, 1
      %p84 = por %p82, %p83
      %p86 = scmp.ne.s32.totalorder %s69, %s85
      %p87 = scmp.eq.s32.totalorder %s23, 0
      %p88 = por %p86, %p87
      %s90 = sadd.s32 %s89, 1
      %p93 = scmp.eq.s32.totalorder %s17, 1
      %p94 = scmp.ne.s32.totalorder %s89, %s91
      %p95 = scmp.eq.s32.totalorder %s17, 0
      %p96 = por %p94, %p95
      %p97 = scmp.ne.s32.totalorder %s89, %s91
      %p98 = scmp.eq.s32.totalorder %s22, 1
      %p99 = por %p97, %p98
      %p100 = scmp.ne.s32.totalorder %s91, %s92
      %p101 = scmp.eq.s32.totalorder %s22, 0
      %p102 = por %p100, %p101
      %p103 = scmp.ne.s32.totalorder %s91, %s92
      %p104 = scmp.eq.s32.totalorder %s23, 1
      %p105 = por %p103, %p104
      %p107 = scmp.ne.s32.totalorder %s92, %s106
      %p108 = scmp.eq.s32.totalorder %s23, 0
      %p109 = por %p107, %p108
      %s111 = sadd.s32 %s110, 1
      %p114 = scmp.eq.s32.totalorder %s17, 1
      %p115 = scmp.ne.s32.totalorder %s110, %s112
      %p116 = scmp.eq.s32.totalorder %s17, 0
      %p117 = por %p115, %p116
      %p118 = scmp.ne.s32.totalorder %s110, %s112
      %p119 = scmp.eq.s32.totalorder %s22, 1
      %p120 = por %p118, %p119
      %p121 = scmp.ne.s32.totalorder %s112, %s113
      %p122 = scmp.eq.s32.totalorder %s22, 0
      %p123 = por %p121, %p122
      %p124 = scmp.ne.s32.totalorder %s112, %s113
      %p125 = scmp.eq.s32.totalorder %s23, 1
      %p126 = por %p124, %p125
      %p128 = scmp.ne.s32.totalorder %s113, %s127
      %p129 = scmp.eq.s32.totalorder %s23, 0
      %p130 = por %p128, %p129
      %s131 = ssub.s32 %s24, %s36
      %s132 = ssub.s32 %s25, %s32
      %s133 = sor.u32 %s131, %s132
      %p134 = scmp.eq.s32.totalorder %s133, 0
      %s136 = sadd.s32 %s135, 1
      %s137 = scalar_select %p134, %s135, %s136
      %p140 = pneg %p134
      %p141 = scmp.eq.s32.totalorder %s17, 1
      %p142 = por %p140, %p141
      %p143 = scmp.ne.s32.totalorder %s135, %s138
      %p144 = scmp.eq.s32.totalorder %s17, 0
      %p145 = por %p143, %p144
      %p146 = scmp.ne.s32.totalorder %s135, %s138
      %p147 = scmp.eq.s32.totalorder %s22, 1
      %p148 = por %p146, %p147
      %p149 = scmp.ne.s32.totalorder %s138, %s139
      %p150 = scmp.eq.s32.totalorder %s22, 0
      %p151 = por %p149, %p150
      %p152 = scmp.ne.s32.totalorder %s138, %s139
      %p153 = scmp.eq.s32.totalorder %s23, 1
      %p154 = por %p152, %p153
      %p156 = scmp.ne.s32.totalorder %s139, %s155
      %p157 = scmp.eq.s32.totalorder %s23, 0
      %p158 = por %p156, %p157
      %p159 = scmp.le.s32.totalorder 1, %s17
      %p160 = scmp.lt.s32.totalorder %s17, 3
      %p161 = pnand %p159, %p160
      %p162 = pneg %p161
      // Predicated region
      $region9: #{tpu_custom_call.1} parent=5 // pred_check
        _
      $region10: #{tpu_custom_call.1} parent=5 // pred_check_branch
        %164 = sbr.rel (%p161) target = $region12
      $region11: #{tpu_custom_call.1} parent=5 // pred_region
        %s165 = ssub.s32 %s17, 1
        // Predicated region
        $region13: #{tpu_custom_call.1} parent=11 // pred_check
          %p166 = pneg %p102
        $region14: #{tpu_custom_call.1} parent=11 // pred_check_branch
          %168 = sbr.rel (%p166) target = $region16
        $region15: #{tpu_custom_call.1} parent=11 // pred_region
          %s170 = ssub.s32 256, 256
          %171 = vsyncadd [#allocation9], %s170
          %s172 = sshll.u32 [#allocation8], 4
          %s173 = int_to_ptr.vmem [resolvable:$true] %s172
          %178 = dma.hbm_to_vmem [thread:$0]  %s2, 256, %s173, [#allocation9], 64, 64, 4
        $region16: #{tpu_custom_call.1} parent=11 // pred_fallthru
          _
        // Predicated region
        $region17: #{tpu_custom_call.1} parent=11 // pred_check
          %p179 = pneg %p123
        $region18: #{tpu_custom_call.1} parent=11 // pred_check_branch
          %181 = sbr.rel (%p179) target = $region20
        $region19: #{tpu_custom_call.1} parent=11 // pred_region
          _
        $region20: #{tpu_custom_call.1} parent=11 // pred_fallthru
          _
      $region12: #{tpu_custom_call.1} parent=5 // pred_fallthru
        _
      %p182 = scmp.lt.s32.totalorder %s17, 2
      // Predicated region
      $region21: #{tpu_custom_call.1} parent=5 // pred_check
        %p183 = pneg %p182
      $region22: #{tpu_custom_call.1} parent=5 // pred_check_branch
        %185 = sbr.rel (%p183) target = $region24
      $region23: #{tpu_custom_call.1} parent=5 // pred_region
        // Predicated region
        $region25: #{tpu_custom_call.1} parent=23 // pred_check
          %p186 = pneg %p49
        $region26: #{tpu_custom_call.1} parent=23 // pred_check_branch
          %188 = sbr.rel (%p186) target = $region28
        $region27: #{tpu_custom_call.1} parent=23 // pred_region
          %s189 = sand.u32 %s39, 1
          %s190 = scalar_lea.sflag [#allocation6], %s189
          %s191 = sand.u32 %s39, 1
          %s192 = smul.addr %s191, 8
          %s193 = scalar_lea.vmem [#allocation5], %s192
          %s195 = ssub.s32 128, 128
          %196 = vsyncadd %s190, %s195
          %s197 = smul.addr %s24, 128
          %s198 = scalar_lea.hbm %s0, %s197
          %s200 = sshll.u32 %s193, 4
          %s201 = int_to_ptr.vmem [resolvable:$true] %s200
          %203 = dma.hbm_to_vmem [thread:$0]  %s198, 128, %s201, %s190
        $region28: #{tpu_custom_call.1} parent=23 // pred_fallthru
          _
        // Predicated region
        $region29: #{tpu_custom_call.1} parent=23 // pred_check
          %p204 = pneg %p75
        $region30: #{tpu_custom_call.1} parent=23 // pred_check_branch
          %206 = sbr.rel (%p204) target = $region32
        $region31: #{tpu_custom_call.1} parent=23 // pred_region
          %p207 = scmp.lt.s32.totalorder %s24, 1
          %s208 = scalar_select %p207, %s24, 1
          %s209 = scalar_lea.vmem %s1, %s208
        $region32: #{tpu_custom_call.1} parent=23 // pred_fallthru
          _
      $region24: #{tpu_custom_call.1} parent=5 // pred_fallthru
        _
      %p210 = scmp.le.s32.totalorder 1, %s17
      %p211 = scmp.lt.s32.totalorder %s17, 3
      %p212 = pnand %p210, %p211
      %p213 = pneg %p212
      // Predicated region
      $region33: #{tpu_custom_call.1} parent=5 // pred_check
        _
      $region34: #{tpu_custom_call.1} parent=5 // pred_check_branch
        %215 = sbr.rel (%p212) target = $region36
      $region35: #{tpu_custom_call.1} parent=5 // pred_region
        %s216 = ssub.s32 %s17, 1
        %s217 = sand.u32 %s42, 1
        %s218 = scalar_lea.sflag [#allocation6], %s217
        %s219 = sand.u32 %s42, 1
        %s220 = smul.addr %s219, 8
        %s221 = scalar_lea.vmem [#allocation5], %s220
        // Predicated region
        $region37: #{tpu_custom_call.1} parent=35 // pred_check
          %p222 = pneg %p55
        $region38: #{tpu_custom_call.1} parent=35 // pred_check_branch
          %224 = sbr.rel (%p222) target = $region40
        $region39: #{tpu_custom_call.1} parent=35 // pred_region
          %225 = dma.done %s218, 128
        $region40: #{tpu_custom_call.1} parent=35 // pred_fallthru
          _
        // Predicated region
        $region41: #{tpu_custom_call.1} parent=35 // pred_check
          %p226 = pneg %p102
        $region42: #{tpu_custom_call.1} parent=35 // pred_check_branch
          %228 = sbr.rel (%p226) target = $region44
        $region43: #{tpu_custom_call.1} parent=35 // pred_region
          %229 = dma.done [#allocation9], 256
        $region44: #{tpu_custom_call.1} parent=35 // pred_fallthru
          _
        %s230 = sand.u32 %s42, 1
        %s231 = scalar_lea.sflag [#allocation6], %s230
        %s232 = sand.u32 %s42, 1
        %s233 = smul.addr %s232, 8
        %s234 = scalar_lea.vmem [#allocation5], %s233
        %p235 = pneg %p55
        %p236 = pneg %p52
        %p237 = scmp.lt.s32.totalorder %s26, 1
        %s238 = scalar_select %p237, %s26, 1
        %s239 = scalar_lea.vmem %s1, %s238
        %p240 = pneg %p81
        %p241 = pneg %p78
        %p242 = pneg %p102
        %p243 = pneg %p99
        %p244 = pneg %p123
        %p245 = pneg %p120
        %p246 = pneg %p151
        %p247 = pneg %p148
        %s248 = sand.u32 %s138, 1
        %s249 = scalar_lea.sflag [#allocation7], %s248
        %s250 = sand.u32 %s138, 1
        %s251 = smul.addr %s250, 8
        %s252 = scalar_lea.vmem [#allocation10], %s251
        %p253 = scmp.lt.s32.totalorder %s26, 1
        %s254 = scalar_select %p253, %s26, 1
        %s255 = scalar_lea.vmem %s1, %s254
        %p257 = scmp.eq.s32.totalorder %s27, 0
        // Predicated region
        $region45: #{tpu_custom_call.1} parent=35 // pred_check
          %p258 = pneg %p257
        $region46: #{tpu_custom_call.1} parent=35 // pred_check_branch
          %260 = sbr.rel (%p258) target = $region48
        $region47: #{tpu_custom_call.1} parent=35 // pred_region
          %v261 = vld [vmem:[%s221] sm:$0xff]
          %v262 = vpack.c.bf16 %v261, %v261
          %v263 = vld [vmem:[#allocation8] sm:$0xf]
          %v264 = vld [vmem:[#allocation8 + $0x4] sm:$0xf]
          %v265 = vld [vmem:[#allocation8 + $0x8] sm:$0xf]
          %v266 = vld [vmem:[#allocation8 + $0xc] sm:$0xf]
          %v267 = vld [vmem:[%s3] sm:$0x1]
          %v269 = vlaneseq
          %v270 = vshrl.u32 %v269, 7
          %v271 = vsub.s32 0, %v270
          %v272 = vrot.slane %v267, %v271
          %v278 = vunpack.c.l.b16 %v263
          %v279 = vunpack.c.l.b16 %v264
          %v280 = vunpack.c.l.b16 %v265
          %v281 = vunpack.c.l.b16 %v266
          %v282 = vpack.c.b16 %v279, %v278
          %v283 = vpack.c.b16 %v281, %v280
          %vm286 = vcmask 261120
          %v288 = vsel %vm286, %v262, 0
          %290 = vmatprep.subr.bf16.mxu0 0
          %291 = vmatpush1.bf16.msra.mxu0 %v282
          %292 = vmatprep.subr.bf16.mxu0 0
          %293 = vmatpush1.bf16.msra.mxu0 %v283
          %294 = vmatprep.subr.bf16.mxu0 0
          %295 = vmatpush1.bf16.msra.mxu0 0
          %296 = vmatprep.subr.bf16.mxu0 0
          %297 = vmatpush1.bf16.msra.mxu0 0
          %298 = vmatprep.subr.bf16.mxu0 0
          %299 = vmatpush1.bf16.msra.mxu0 0
          %300 = vmatprep.subr.bf16.mxu0 0
          %301 = vmatpush1.bf16.msra.mxu0 0
          %302 = vmatprep.subr.bf16.mxu0 0
          %303 = vmatpush1.bf16.msra.mxu0 0
          %304 = vmatprep.subr.bf16.mxu0 0
          %305 = vmatpush1.bf16.msra.mxu0 0
          %306 = vmatprep.subr.bf16.mxu0 0
          %307 = vmatpush1.bf16.msra.mxu0 0
          %308 = vmatprep.subr.bf16.mxu0 0
          %309 = vmatpush1.bf16.msra.mxu0 0
          %310 = vmatprep.subr.bf16.mxu0 0
          %311 = vmatpush1.bf16.msra.mxu0 0
          %312 = vmatprep.subr.bf16.mxu0 0
          %313 = vmatpush1.bf16.msra.mxu0 0
          %314 = vmatprep.subr.bf16.mxu0 0
          %315 = vmatpush1.bf16.msra.mxu0 0
          %316 = vmatprep.subr.bf16.mxu0 0
          %317 = vmatpush1.bf16.msra.mxu0 0
          %318 = vmatprep.subr.bf16.mxu0 0
          %319 = vmatpush1.bf16.msra.mxu0 0
          %320 = vmatprep.subr.bf16.mxu0 0
          %321 = vmatpush1.bf16.msra.mxu0 0
          %322 = vmatprep.mubr.bf16.mxu0 0
          %323 = vmatmul.mubr.bf16.gmra.mrb[0].mxu0 %v288
          %v324 = vpop.f32.mrb[0].mxu0
          %v325 = vadd.f32 %v272, %v324
          %v326 = vpop.f32.mrb[0].mxu0
          %v327 = vpop.f32.mrb[0].mxu0
          %v328 = vpop.f32.mrb[0].mxu0
          %329 = vdwg.mxu0
          %v330 = vpack.c.bf16 %v325, %v325
          %332 = vrot.lane.b32.xlu0 %v330, 120
          %v333 = vpop.permute.xlu0 %332
          %334 = vrot.lane.b32.xlu0 %v330, 112
          %v335 = vpop.permute.xlu0 %334
          %336 = vrot.lane.b32.xlu0 %v330, 104
          %v337 = vpop.permute.xlu0 %336
          %v339 = vunpack.c.l.s4 1983009808
          %v340 = vunpack.c.0.s8 %v339
          %v341 = vlaneseq
          %v342 = vshrl.u32 %v341, 7
          %v343 = vsub.s32 %v340, %v342
          %v344 = vrot.slane %v330, %v343
          %v347 = vunpack.c.l.s4 1983009808
          %v348 = vunpack.c.0.s8 %v347
          %v349 = vlaneseq
          %v350 = vshrl.u32 %v349, 7
          %v351 = vsub.s32 %v348, %v350
          %v352 = vrot.slane %v335, %v351
          %v353 = vcombine.low %v344, %v352
          %v354 = vcombine.high %v344, %v352
          %v356 = vunpack.c.l.s4 1934713408
          %v357 = vunpack.c.0.s8 %v356
          %v358 = vlaneseq
          %v359 = vshrl.u32 %v358, 7
          %v360 = vsub.s32 %v357, %v359
          %v361 = vrot.slane %v353, %v360
          %v363 = vunpack.c.l.s4 1934713408
          %v364 = vunpack.c.0.s8 %v363
          %v365 = vlaneseq
          %v366 = vshrl.u32 %v365, 7
          %v367 = vsub.s32 %v364, %v366
          %v368 = vrot.slane %v354, %v367
          %v369 = vcombine.high %v361, 0
          %v370 = vcombine.high %v368, 0
          %v373 = vunpack.c.l.s4 1983009808
          %v374 = vunpack.c.0.s8 %v373
          %v375 = vlaneseq
          %v376 = vshrl.u32 %v375, 7
          %v377 = vsub.s32 %v374, %v376
          %v378 = vrot.slane %v333, %v377
          %v381 = vunpack.c.l.s4 1983009808
          %v382 = vunpack.c.0.s8 %v381
          %v383 = vlaneseq
          %v384 = vshrl.u32 %v383, 7
          %v385 = vsub.s32 %v382, %v384
          %v386 = vrot.slane %v337, %v385
          %v387 = vcombine.low %v378, %v386
          %v388 = vcombine.high %v378, %v386
          %v390 = vunpack.c.l.s4 1934713408
          %v391 = vunpack.c.0.s8 %v390
          %v392 = vlaneseq
          %v393 = vshrl.u32 %v392, 7
          %v394 = vsub.s32 %v391, %v393
          %v395 = vrot.slane %v387, %v394
          %v397 = vunpack.c.l.s4 1934713408
          %v398 = vunpack.c.0.s8 %v397
          %v399 = vlaneseq
          %v400 = vshrl.u32 %v399, 7
          %v401 = vsub.s32 %v398, %v400
          %v402 = vrot.slane %v388, %v401
          %v403 = vcombine.high %v395, 0
          %v404 = vcombine.high %v402, 0
          %v407 = vpack.i.b16 %v395, %v361
          %v409 = vshrl.u32 %v361, 16
          %v410 = vshrl.u32 %v395, 16
          %v411 = vpack.i.b16 %v410, %v409
          %v415 = vpack.i.b16 %v403, %v369
          %v417 = vshrl.u32 %v369, 16
          %v418 = vshrl.u32 %v403, 16
          %v419 = vpack.i.b16 %v418, %v417
          %v423 = vpack.i.b16 %v402, %v368
          %v425 = vshrl.u32 %v368, 16
          %v426 = vshrl.u32 %v402, 16
          %v427 = vpack.i.b16 %v426, %v425
          %v431 = vpack.i.b16 %v404, %v370
          %v433 = vshrl.u32 %v370, 16
          %v434 = vshrl.u32 %v404, 16
          %v435 = vpack.i.b16 %v434, %v433
          %437 = vrot.lane.b32.xlu0 %v330, 96
          %v438 = vpop.permute.xlu0 %437
          %439 = vrot.lane.b32.xlu0 %v333, 96
          %v440 = vpop.permute.xlu0 %439
          %441 = vrot.lane.b32.xlu0 %v335, 96
          %v442 = vpop.permute.xlu0 %441
          %443 = vrot.lane.b32.xlu0 %v337, 96
          %v444 = vpop.permute.xlu0 %443
          %v447 = vunpack.c.l.s4 1983009808
          %v448 = vunpack.c.0.s8 %v447
          %v449 = vlaneseq
          %v450 = vshrl.u32 %v449, 7
          %v451 = vsub.s32 %v448, %v450
          %v452 = vrot.slane %v438, %v451
          %v455 = vunpack.c.l.s4 1983009808
          %v456 = vunpack.c.0.s8 %v455
          %v457 = vlaneseq
          %v458 = vshrl.u32 %v457, 7
          %v459 = vsub.s32 %v456, %v458
          %v460 = vrot.slane %v442, %v459
          %v461 = vcombine.low %v452, %v460
          %v462 = vcombine.high %v452, %v460
          %v464 = vunpack.c.l.s4 1934713408
          %v465 = vunpack.c.0.s8 %v464
          %v466 = vlaneseq
          %v467 = vshrl.u32 %v466, 7
          %v468 = vsub.s32 %v465, %v467
          %v469 = vrot.slane %v461, %v468
          %v471 = vunpack.c.l.s4 1934713408
          %v472 = vunpack.c.0.s8 %v471
          %v473 = vlaneseq
          %v474 = vshrl.u32 %v473, 7
          %v475 = vsub.s32 %v472, %v474
          %v476 = vrot.slane %v462, %v475
          %v477 = vcombine.high %v469, 0
          %v478 = vcombine.high %v476, 0
          %v481 = vunpack.c.l.s4 1983009808
          %v482 = vunpack.c.0.s8 %v481
          %v483 = vlaneseq
          %v484 = vshrl.u32 %v483, 7
          %v485 = vsub.s32 %v482, %v484
          %v486 = vrot.slane %v440, %v485
          %v489 = vunpack.c.l.s4 1983009808
          %v490 = vunpack.c.0.s8 %v489
          %v491 = vlaneseq
          %v492 = vshrl.u32 %v491, 7
          %v493 = vsub.s32 %v490, %v492
          %v494 = vrot.slane %v444, %v493
          %v495 = vcombine.low %v486, %v494
          %v496 = vcombine.high %v486, %v494
          %v498 = vunpack.c.l.s4 1934713408
          %v499 = vunpack.c.0.s8 %v498
          %v500 = vlaneseq
          %v501 = vshrl.u32 %v500, 7
          %v502 = vsub.s32 %v499, %v501
          %v503 = vrot.slane %v495, %v502
          %v505 = vunpack.c.l.s4 1934713408
          %v506 = vunpack.c.0.s8 %v505
          %v507 = vlaneseq
          %v508 = vshrl.u32 %v507, 7
          %v509 = vsub.s32 %v506, %v508
          %v510 = vrot.slane %v496, %v509
          %v511 = vcombine.high %v503, 0
          %v512 = vcombine.high %v510, 0
          %v515 = vpack.i.b16 %v503, %v469
          %v517 = vshrl.u32 %v469, 16
          %v518 = vshrl.u32 %v503, 16
          %v519 = vpack.i.b16 %v518, %v517
          %v523 = vpack.i.b16 %v511, %v477
          %v525 = vshrl.u32 %v477, 16
          %v526 = vshrl.u32 %v511, 16
          %v527 = vpack.i.b16 %v526, %v525
          %v531 = vpack.i.b16 %v510, %v476
          %v533 = vshrl.u32 %v476, 16
          %v534 = vshrl.u32 %v510, 16
          %v535 = vpack.i.b16 %v534, %v533
          %v539 = vpack.i.b16 %v512, %v478
          %v541 = vshrl.u32 %v478, 16
          %v542 = vshrl.u32 %v512, 16
          %v543 = vpack.i.b16 %v542, %v541
          %545 = vrot.lane.b32.xlu0 %v330, 64
          %v546 = vpop.permute.xlu0 %545
          %547 = vrot.lane.b32.xlu0 %v333, 64
          %v548 = vpop.permute.xlu0 %547
          %549 = vrot.lane.b32.xlu0 %v335, 64
          %v550 = vpop.permute.xlu0 %549
          %551 = vrot.lane.b32.xlu0 %v337, 64
          %v552 = vpop.permute.xlu0 %551
          %v555 = vunpack.c.l.s4 1983009808
          %v556 = vunpack.c.0.s8 %v555
          %v557 = vlaneseq
          %v558 = vshrl.u32 %v557, 7
          %v559 = vsub.s32 %v556, %v558
          %v560 = vrot.slane %v546, %v559
          %v563 = vunpack.c.l.s4 1983009808
          %v564 = vunpack.c.0.s8 %v563
          %v565 = vlaneseq
          %v566 = vshrl.u32 %v565, 7
          %v567 = vsub.s32 %v564, %v566
          %v568 = vrot.slane %v550, %v567
          %v569 = vcombine.low %v560, %v568
          %v570 = vcombine.high %v560, %v568
          %v572 = vunpack.c.l.s4 1934713408
          %v573 = vunpack.c.0.s8 %v572
          %v574 = vlaneseq
          %v575 = vshrl.u32 %v574, 7
          %v576 = vsub.s32 %v573, %v575
          %v577 = vrot.slane %v569, %v576
          %v579 = vunpack.c.l.s4 1934713408
          %v580 = vunpack.c.0.s8 %v579
          %v581 = vlaneseq
          %v582 = vshrl.u32 %v581, 7
          %v583 = vsub.s32 %v580, %v582
          %v584 = vrot.slane %v570, %v583
          %v585 = vcombine.high %v577, 0
          %v586 = vcombine.high %v584, 0
          %v589 = vunpack.c.l.s4 1983009808
          %v590 = vunpack.c.0.s8 %v589
          %v591 = vlaneseq
          %v592 = vshrl.u32 %v591, 7
          %v593 = vsub.s32 %v590, %v592
          %v594 = vrot.slane %v548, %v593
          %v597 = vunpack.c.l.s4 1983009808
          %v598 = vunpack.c.0.s8 %v597
          %v599 = vlaneseq
          %v600 = vshrl.u32 %v599, 7
          %v601 = vsub.s32 %v598, %v600
          %v602 = vrot.slane %v552, %v601
          %v603 = vcombine.low %v594, %v602
          %v604 = vcombine.high %v594, %v602
          %v606 = vunpack.c.l.s4 1934713408
          %v607 = vunpack.c.0.s8 %v606
          %v608 = vlaneseq
          %v609 = vshrl.u32 %v608, 7
          %v610 = vsub.s32 %v607, %v609
          %v611 = vrot.slane %v603, %v610
          %v613 = vunpack.c.l.s4 1934713408
          %v614 = vunpack.c.0.s8 %v613
          %v615 = vlaneseq
          %v616 = vshrl.u32 %v615, 7
          %v617 = vsub.s32 %v614, %v616
          %v618 = vrot.slane %v604, %v617
          %v619 = vcombine.high %v611, 0
          %v620 = vcombine.high %v618, 0
          %v623 = vpack.i.b16 %v611, %v577
          %v625 = vshrl.u32 %v577, 16
          %v626 = vshrl.u32 %v611, 16
          %v627 = vpack.i.b16 %v626, %v625
          %v631 = vpack.i.b16 %v619, %v585
          %v633 = vshrl.u32 %v585, 16
          %v634 = vshrl.u32 %v619, 16
          %v635 = vpack.i.b16 %v634, %v633
          %v639 = vpack.i.b16 %v618, %v584
          %v641 = vshrl.u32 %v584, 16
          %v642 = vshrl.u32 %v618, 16
          %v643 = vpack.i.b16 %v642, %v641
          %v647 = vpack.i.b16 %v620, %v586
          %v649 = vshrl.u32 %v586, 16
          %v650 = vshrl.u32 %v620, 16
          %v651 = vpack.i.b16 %v650, %v649
          %v653 = vcombine.low %v407, %v423
          %v655 = vunpack.c.l.s4 1983009808
          %v656 = vunpack.c.0.s8 %v655
          %v657 = vlaneseq
          %v658 = vshrl.u32 %v657, 7
          %v659 = vsub.s32 %v656, %v658
          %v660 = vrot.slane %v653, %v659
          %v661 = vcombine.low %v415, %v431
          %v663 = vunpack.c.l.s4 1983009808
          %v664 = vunpack.c.0.s8 %v663
          %v665 = vlaneseq
          %v666 = vshrl.u32 %v665, 7
          %v667 = vsub.s32 %v664, %v666
          %v668 = vrot.slane %v661, %v667
          %v669 = vcombine.low %v660, %v668
          %v671 = vunpack.c.l.s4 1934713408
          %v672 = vunpack.c.0.s8 %v671
          %v673 = vlaneseq
          %v674 = vshrl.u32 %v673, 7
          %v675 = vsub.s32 %v672, %v674
          %v676 = vrot.slane %v669, %v675
          %v677 = vcombine.high %v676, 0
          %v678 = vcombine.low %v411, %v427
          %v680 = vunpack.c.l.s4 1983009808
          %v681 = vunpack.c.0.s8 %v680
          %v682 = vlaneseq
          %v683 = vshrl.u32 %v682, 7
          %v684 = vsub.s32 %v681, %v683
          %v685 = vrot.slane %v678, %v684
          %v686 = vcombine.low %v419, %v435
          %v688 = vunpack.c.l.s4 1983009808
          %v689 = vunpack.c.0.s8 %v688
          %v690 = vlaneseq
          %v691 = vshrl.u32 %v690, 7
          %v692 = vsub.s32 %v689, %v691
          %v693 = vrot.slane %v686, %v692
          %v694 = vcombine.low %v685, %v693
          %v696 = vunpack.c.l.s4 1934713408
          %v697 = vunpack.c.0.s8 %v696
          %v698 = vlaneseq
          %v699 = vshrl.u32 %v698, 7
          %v700 = vsub.s32 %v697, %v699
          %v701 = vrot.slane %v694, %v700
          %v702 = vcombine.high %v701, 0
          %v705 = vpack.i.b16 %v701, %v676
          %v707 = vshrl.u32 %v676, 16
          %v708 = vshrl.u32 %v701, 16
          %v709 = vpack.i.b16 %v708, %v707
          %v713 = vpack.i.b16 %v702, %v677
          %v715 = vshrl.u32 %v677, 16
          %v716 = vshrl.u32 %v702, 16
          %v717 = vpack.i.b16 %v716, %v715
          %vm719 = vcmask 60416
          %720 = vst.msk [vmem:[#allocation2] sm:$0xf] %vm719, %v705
          %721 = vst.msk [vmem:[#allocation2 + $0x4] sm:$0xf] %vm719, %v709
          %722 = vst.msk [vmem:[#allocation2 + $0x8] sm:$0xf] %vm719, %v713
          %723 = vst.msk [vmem:[#allocation2 + $0xc] sm:$0xf] %vm719, %v717
          %v724 = vcombine.low %v515, %v531
          %v726 = vunpack.c.l.s4 1983009808
          %v727 = vunpack.c.0.s8 %v726
          %v728 = vlaneseq
          %v729 = vshrl.u32 %v728, 7
          %v730 = vsub.s32 %v727, %v729
          %v731 = vrot.slane %v724, %v730
          %v732 = vcombine.low %v523, %v539
          %v734 = vunpack.c.l.s4 1983009808
          %v735 = vunpack.c.0.s8 %v734
          %v736 = vlaneseq
          %v737 = vshrl.u32 %v736, 7
          %v738 = vsub.s32 %v735, %v737
          %v739 = vrot.slane %v732, %v738
          %v740 = vcombine.low %v731, %v739
          %v742 = vunpack.c.l.s4 1934713408
          %v743 = vunpack.c.0.s8 %v742
          %v744 = vlaneseq
          %v745 = vshrl.u32 %v744, 7
          %v746 = vsub.s32 %v743, %v745
          %v747 = vrot.slane %v740, %v746
          %v748 = vcombine.high %v747, 0
          %v749 = vcombine.low %v519, %v535
          %v751 = vunpack.c.l.s4 1983009808
          %v752 = vunpack.c.0.s8 %v751
          %v753 = vlaneseq
          %v754 = vshrl.u32 %v753, 7
          %v755 = vsub.s32 %v752, %v754
          %v756 = vrot.slane %v749, %v755
          %v757 = vcombine.low %v527, %v543
          %v759 = vunpack.c.l.s4 1983009808
          %v760 = vunpack.c.0.s8 %v759
          %v761 = vlaneseq
          %v762 = vshrl.u32 %v761, 7
          %v763 = vsub.s32 %v760, %v762
          %v764 = vrot.slane %v757, %v763
          %v765 = vcombine.low %v756, %v764
          %v767 = vunpack.c.l.s4 1934713408
          %v768 = vunpack.c.0.s8 %v767
          %v769 = vlaneseq
          %v770 = vshrl.u32 %v769, 7
          %v771 = vsub.s32 %v768, %v770
          %v772 = vrot.slane %v765, %v771
          %v773 = vcombine.high %v772, 0
          %v776 = vpack.i.b16 %v772, %v747
          %v778 = vshrl.u32 %v747, 16
          %v779 = vshrl.u32 %v772, 16
          %v780 = vpack.i.b16 %v779, %v778
          %v784 = vpack.i.b16 %v773, %v748
          %v786 = vshrl.u32 %v748, 16
          %v787 = vshrl.u32 %v773, 16
          %v788 = vpack.i.b16 %v787, %v786
          %790 = vst.msk [vmem:[#allocation3] sm:$0xf] %vm719, %v776
          %791 = vst.msk [vmem:[#allocation3 + $0x4] sm:$0xf] %vm719, %v780
          %792 = vst.msk [vmem:[#allocation3 + $0x8] sm:$0xf] %vm719, %v784
          %793 = vst.msk [vmem:[#allocation3 + $0xc] sm:$0xf] %vm719, %v788
          %v794 = vcombine.low %v623, %v639
          %v796 = vunpack.c.l.s4 1983009808
          %v797 = vunpack.c.0.s8 %v796
          %v798 = vlaneseq
          %v799 = vshrl.u32 %v798, 7
          %v800 = vsub.s32 %v797, %v799
          %v801 = vrot.slane %v794, %v800
          %v802 = vcombine.low %v631, %v647
          %v804 = vunpack.c.l.s4 1983009808
          %v805 = vunpack.c.0.s8 %v804
          %v806 = vlaneseq
          %v807 = vshrl.u32 %v806, 7
          %v808 = vsub.s32 %v805, %v807
          %v809 = vrot.slane %v802, %v808
          %v810 = vcombine.low %v801, %v809
          %v812 = vunpack.c.l.s4 1934713408
          %v813 = vunpack.c.0.s8 %v812
          %v814 = vlaneseq
          %v815 = vshrl.u32 %v814, 7
          %v816 = vsub.s32 %v813, %v815
          %v817 = vrot.slane %v810, %v816
          %v818 = vcombine.high %v817, 0
          %v819 = vcombine.low %v627, %v643
          %v821 = vunpack.c.l.s4 1983009808
          %v822 = vunpack.c.0.s8 %v821
          %v823 = vlaneseq
          %v824 = vshrl.u32 %v823, 7
          %v825 = vsub.s32 %v822, %v824
          %v826 = vrot.slane %v819, %v825
          %v827 = vcombine.low %v635, %v651
          %v829 = vunpack.c.l.s4 1983009808
          %v830 = vunpack.c.0.s8 %v829
          %v831 = vlaneseq
          %v832 = vshrl.u32 %v831, 7
          %v833 = vsub.s32 %v830, %v832
          %v834 = vrot.slane %v827, %v833
          %v835 = vcombine.low %v826, %v834
          %v837 = vunpack.c.l.s4 1934713408
          %v838 = vunpack.c.0.s8 %v837
          %v839 = vlaneseq
          %v840 = vshrl.u32 %v839, 7
          %v841 = vsub.s32 %v838, %v840
          %v842 = vrot.slane %v835, %v841
          %v843 = vcombine.high %v842, 0
          %v846 = vpack.i.b16 %v842, %v817
          %v848 = vshrl.u32 %v817, 16
          %v849 = vshrl.u32 %v842, 16
          %v850 = vpack.i.b16 %v849, %v848
          %v854 = vpack.i.b16 %v843, %v818
          %v856 = vshrl.u32 %v818, 16
          %v857 = vshrl.u32 %v843, 16
          %v858 = vpack.i.b16 %v857, %v856
          %860 = vst.msk [vmem:[#allocation4] sm:$0xf] %vm719, %v846
          %861 = vst.msk [vmem:[#allocation4 + $0x4] sm:$0xf] %vm719, %v850
          %862 = vst.msk [vmem:[#allocation4 + $0x8] sm:$0xf] %vm719, %v854
          %863 = vst.msk [vmem:[#allocation4 + $0xc] sm:$0xf] %vm719, %v858
        $region48: #{tpu_custom_call.1} parent=35 // pred_fallthru
          _
        %s864 = smul.u32 %s27, 8
        %s865 = sshra.s32 %s864, 3
        %s866 = sand.u32 %s864, 7
        %s867 = smul.addr %s865, 4
        %s868 = scalar_lea.vmem [#allocation2], %s867
        %v869 = vld [vmem:[%s868] sm:$0xf]
        %v870 = vld [vmem:[%s868 + $0x4] sm:$0xf]
        %v871 = vld [vmem:[%s868 + $0x8] sm:$0xf]
        %v872 = vld [vmem:[%s868 + $0xc] sm:$0xf]
        %v873 = vld [vmem:[#allocation3] sm:$0xf]
        %v874 = vld [vmem:[#allocation3 + $0x4] sm:$0xf]
        %v875 = vld [vmem:[#allocation3 + $0x8] sm:$0xf]
        %v876 = vld [vmem:[#allocation3 + $0xc] sm:$0xf]
        %v877 = vld [vmem:[#allocation4] sm:$0xf]
        %v878 = vld [vmem:[#allocation4 + $0x4] sm:$0xf]
        %v879 = vld [vmem:[#allocation4 + $0x8] sm:$0xf]
        %v880 = vld [vmem:[#allocation4 + $0xc] sm:$0xf]
        %vm881 = vcmask 64512
        %v883 = vsel %vm881, %v869, 0
        %v886 = vsel %vm881, %v873, 0
        %888 = vmatprep.subr.bf16.mxu0 0
        %889 = vmatpush1.bf16.xpose.msra.mxu0 %v886
        %890 = vmatprep.subr.bf16.mxu0 0
        %891 = vmatpush1.bf16.xpose.msra.mxu0 0
        %892 = vmatprep.subr.bf16.mxu0 0
        %893 = vmatpush1.bf16.xpose.msra.mxu0 0
        %894 = vmatprep.subr.bf16.mxu0 0
        %895 = vmatpush1.bf16.xpose.msra.mxu0 0
        %896 = vmatprep.subr.bf16.mxu0 0
        %897 = vmatpush1.bf16.xpose.msra.mxu0 0
        %898 = vmatprep.subr.bf16.mxu0 0
        %899 = vmatpush1.bf16.xpose.msra.mxu0 0
        %900 = vmatprep.subr.bf16.mxu0 0
        %901 = vmatpush1.bf16.xpose.msra.mxu0 0
        %902 = vmatprep.subr.bf16.mxu0 0
        %903 = vmatpush1.bf16.xpose.msra.mxu0 0
        %904 = vmatprep.subr.bf16.mxu0 0
        %905 = vmatpush1.bf16.xpose.msra.mxu0 0
        %906 = vmatprep.subr.bf16.mxu0 0
        %907 = vmatpush1.bf16.xpose.msra.mxu0 0
        %908 = vmatprep.subr.bf16.mxu0 0
        %909 = vmatpush1.bf16.xpose.msra.mxu0 0
        %910 = vmatprep.subr.bf16.mxu0 0
        %911 = vmatpush1.bf16.xpose.msra.mxu0 0
        %912 = vmatprep.subr.bf16.mxu0 0
        %913 = vmatpush1.bf16.xpose.msra.mxu0 0
        %914 = vmatprep.subr.bf16.mxu0 0
        %915 = vmatpush1.bf16.xpose.msra.mxu0 0
        %916 = vmatprep.subr.bf16.mxu0 0
        %917 = vmatpush1.bf16.xpose.msra.mxu0 0
        %918 = vmatprep.subr.bf16.mxu0 0
        %919 = vmatpush1.bf16.xpose.msra.mxu0 0
        %920 = vmatprep.mubr.bf16.mxu0 0
        %921 = vmatmul.mubr.bf16.gmra.mrb[0].mxu0 %v883
        %v922 = vpop.f32.mrb[0].mxu0
        %v923 = vadd.f32 0.0, %v922
        %v924 = vpop.f32.mrb[0].mxu0
        %v925 = vpop.f32.mrb[0].mxu0
        %v926 = vpop.f32.mrb[0].mxu0
        %927 = vdwg.mxu0
        %v929 = vsel %vm881, %v870, 0
        %v932 = vsel %vm881, %v874, 0
        %934 = vmatprep.subr.bf16.mxu0 0
        %935 = vmatpush1.bf16.xpose.msra.mxu0 %v932
        %936 = vmatprep.subr.bf16.mxu0 0
        %937 = vmatpush1.bf16.xpose.msra.mxu0 0
        %938 = vmatprep.subr.bf16.mxu0 0
        %939 = vmatpush1.bf16.xpose.msra.mxu0 0
        %940 = vmatprep.subr.bf16.mxu0 0
        %941 = vmatpush1.bf16.xpose.msra.mxu0 0
        %942 = vmatprep.subr.bf16.mxu0 0
        %943 = vmatpush1.bf16.xpose.msra.mxu0 0
        %944 = vmatprep.subr.bf16.mxu0 0
        %945 = vmatpush1.bf16.xpose.msra.mxu0 0
        %946 = vmatprep.subr.bf16.mxu0 0
        %947 = vmatpush1.bf16.xpose.msra.mxu0 0
        %948 = vmatprep.subr.bf16.mxu0 0
        %949 = vmatpush1.bf16.xpose.msra.mxu0 0
        %950 = vmatprep.subr.bf16.mxu0 0
        %951 = vmatpush1.bf16.xpose.msra.mxu0 0
        %952 = vmatprep.subr.bf16.mxu0 0
        %953 = vmatpush1.bf16.xpose.msra.mxu0 0
        %954 = vmatprep.subr.bf16.mxu0 0
        %955 = vmatpush1.bf16.xpose.msra.mxu0 0
        %956 = vmatprep.subr.bf16.mxu0 0
        %957 = vmatpush1.bf16.xpose.msra.mxu0 0
        %958 = vmatprep.subr.bf16.mxu0 0
        %959 = vmatpush1.bf16.xpose.msra.mxu0 0
        %960 = vmatprep.subr.bf16.mxu0 0
        %961 = vmatpush1.bf16.xpose.msra.mxu0 0
        %962 = vmatprep.subr.bf16.mxu0 0
        %963 = vmatpush1.bf16.xpose.msra.mxu0 0
        %964 = vmatprep.subr.bf16.mxu0 0
        %965 = vmatpush1.bf16.xpose.msra.mxu0 0
        %966 = vmatprep.mubr.bf16.mxu0 0
        %967 = vmatmul.mubr.bf16.gmra.mrb[0].mxu0 %v929
        %v968 = vpop.f32.mrb[0].mxu0
        %v969 = vadd.f32 0.0, %v968
        %v970 = vpop.f32.mrb[0].mxu0
        %v971 = vpop.f32.mrb[0].mxu0
        %v972 = vpop.f32.mrb[0].mxu0
        %973 = vdwg.mxu0
        %v975 = vsel %vm881, %v871, 0
        %v978 = vsel %vm881, %v875, 0
        %980 = vmatprep.subr.bf16.mxu0 0
        %981 = vmatpush1.bf16.xpose.msra.mxu0 %v978
        %982 = vmatprep.subr.bf16.mxu0 0
        %983 = vmatpush1.bf16.xpose.msra.mxu0 0
        %984 = vmatprep.subr.bf16.mxu0 0
        %985 = vmatpush1.bf16.xpose.msra.mxu0 0
        %986 = vmatprep.subr.bf16.mxu0 0
        %987 = vmatpush1.bf16.xpose.msra.mxu0 0
        %988 = vmatprep.subr.bf16.mxu0 0
        %989 = vmatpush1.bf16.xpose.msra.mxu0 0
        %990 = vmatprep.subr.bf16.mxu0 0
        %991 = vmatpush1.bf16.xpose.msra.mxu0 0
        %992 = vmatprep.subr.bf16.mxu0 0
        %993 = vmatpush1.bf16.xpose.msra.mxu0 0
        %994 = vmatprep.subr.bf16.mxu0 0
        %995 = vmatpush1.bf16.xpose.msra.mxu0 0
        %996 = vmatprep.subr.bf16.mxu0 0
        %997 = vmatpush1.bf16.xpose.msra.mxu0 0
        %998 = vmatprep.subr.bf16.mxu0 0
        %999 = vmatpush1.bf16.xpose.msra.mxu0 0
        %1000 = vmatprep.subr.bf16.mxu0 0
        %1001 = vmatpush1.bf16.xpose.msra.mxu0 0
        %1002 = vmatprep.subr.bf16.mxu0 0
        %1003 = vmatpush1.bf16.xpose.msra.mxu0 0
        %1004 = vmatprep.subr.bf16.mxu0 0
        %1005 = vmatpush1.bf16.xpose.msra.mxu0 0
        %1006 = vmatprep.subr.bf16.mxu0 0
        %1007 = vmatpush1.bf16.xpose.msra.mxu0 0
        %1008 = vmatprep.subr.bf16.mxu0 0
        %1009 = vmatpush1.bf16.xpose.msra.mxu0 0
        %1010 = vmatprep.subr.bf16.mxu0 0
        %1011 = vmatpush1.bf16.xpose.msra.mxu0 0
        %1012 = vmatprep.mubr.bf16.mxu0 0
        %1013 = vmatmul.mubr.bf16.gmra.mrb[0].mxu0 %v975
        %v1014 = vpop.f32.mrb[0].mxu0
        %v1015 = vadd.f32 0.0, %v1014
        %v1016 = vpop.f32.mrb[0].mxu0
        %v1017 = vpop.f32.mrb[0].mxu0
        %v1018 = vpop.f32.mrb[0].mxu0
        %1019 = vdwg.mxu0
        %v1021 = vsel %vm881, %v872, 0
        %v1024 = vsel %vm881, %v876, 0
        %1026 = vmatprep.subr.bf16.mxu0 0
        %1027 = vmatpush1.bf16.xpose.msra.mxu0 %v1024
        %1028 = vmatprep.subr.bf16.mxu0 0
        %1029 = vmatpush1.bf16.xpose.msra.mxu0 0
        %1030 = vmatprep.subr.bf16.mxu0 0
        %1031 = vmatpush1.bf16.xpose.msra.mxu0 0
        %1032 = vmatprep.subr.bf16.mxu0 0
        %1033 = vmatpush1.bf16.xpose.msra.mxu0 0
        %1034 = vmatprep.subr.bf16.mxu0 0
        %1035 = vmatpush1.bf16.xpose.msra.mxu0 0
        %1036 = vmatprep.subr.bf16.mxu0 0
        %1037 = vmatpush1.bf16.xpose.msra.mxu0 0
        %1038 = vmatprep.subr.bf16.mxu0 0
        %1039 = vmatpush1.bf16.xpose.msra.mxu0 0
        %1040 = vmatprep.subr.bf16.mxu0 0
        %1041 = vmatpush1.bf16.xpose.msra.mxu0 0
        %1042 = vmatprep.subr.bf16.mxu0 0
        %1043 = vmatpush1.bf16.xpose.msra.mxu0 0
        %1044 = vmatprep.subr.bf16.mxu0 0
        %1045 = vmatpush1.bf16.xpose.msra.mxu0 0
        %1046 = vmatprep.subr.bf16.mxu0 0
        %1047 = vmatpush1.bf16.xpose.msra.mxu0 0
        %1048 = vmatprep.subr.bf16.mxu0 0
        %1049 = vmatpush1.bf16.xpose.msra.mxu0 0
        %1050 = vmatprep.subr.bf16.mxu0 0
        %1051 = vmatpush1.bf16.xpose.msra.mxu0 0
        %1052 = vmatprep.subr.bf16.mxu0 0
        %1053 = vmatpush1.bf16.xpose.msra.mxu0 0
        %1054 = vmatprep.subr.bf16.mxu0 0
        %1055 = vmatpush1.bf16.xpose.msra.mxu0 0
        %1056 = vmatprep.subr.bf16.mxu0 0
        %1057 = vmatpush1.bf16.xpose.msra.mxu0 0
        %1058 = vmatprep.mubr.bf16.mxu0 0
        %1059 = vmatmul.mubr.bf16.gmra.mrb[0].mxu0 %v1021
        %v1060 = vpop.f32.mrb[0].mxu0
        %v1061 = vadd.f32 0.0, %v1060
        %v1062 = vpop.f32.mrb[0].mxu0
        %v1063 = vpop.f32.mrb[0].mxu0
        %v1064 = vpop.f32.mrb[0].mxu0
        %1065 = vdwg.mxu0
        %v1066 = vmul.f32 %v923, 0.35355338
        %v1067 = vmul.f32 %v969, 0.35355338
        %v1068 = vmul.f32 %v1015, 0.35355338
        %v1069 = vmul.f32 %v1061, 0.35355338
        %v1070 = vld [vmem:[%s255] sm:$0x1]
        %v1072 = vlaneseq
        %v1073 = vshrl.u32 %v1072, 7
        %v1074 = vsub.s32 0, %v1073
        %v1075 = vrot.slane %v1070, %v1074
        %v1077 = vadd.f32 %v1066, %v1075
        %v1078 = vadd.f32 %v1067, %v1075
        %v1079 = vadd.f32 %v1068, %v1075
        %v1080 = vadd.f32 %v1069, %v1075
        %v1081 = vsel %vm881, %v1077, -inf
        %1082 = vmax.xlane.f32.xlu0 %v1081
        %v1083 = vpop.xlane.xlu0 %1082
        %v1084 = vsel %vm881, %v1078, -inf
        %1085 = vmax.xlane.f32.xlu0 %v1084
        %v1086 = vpop.xlane.xlu0 %1085
        %v1087 = vsel %vm881, %v1079, -inf
        %1088 = vmax.xlane.f32.xlu0 %v1087
        %v1089 = vpop.xlane.xlu0 %1088
        %v1090 = vsel %vm881, %v1080, -inf
        %1091 = vmax.xlane.f32.xlu0 %v1090
        %v1092 = vpop.xlane.xlu0 %1091
        %v1093 = vsub.f32 %v1077, %v1083
        %v1094 = vsub.f32 %v1078, %v1086
        %v1095 = vsub.f32 %v1079, %v1089
        %v1096 = vsub.f32 %v1080, %v1092
        %v1097 = vmul.f32 %v1093, 1.442695
        %v1098 = vpow.pop %v1097
        %v1099 = vmul.f32 %v1094, 1.442695
        %v1100 = vpow.pop %v1099
        %v1101 = vmul.f32 %v1095, 1.442695
        %v1102 = vpow.pop %v1101
        %v1103 = vmul.f32 %v1096, 1.442695
        %v1104 = vpow.pop %v1103
        %v1105 = vsel %vm881, %v1098, 0.0
        %1106 = vadd.xlane.f32.xlu0 %v1105
        %v1107 = vpop.xlane.xlu0 %1106
        %v1108 = vsel %vm881, %v1100, 0.0
        %1109 = vadd.xlane.f32.xlu0 %v1108
        %v1110 = vpop.xlane.xlu0 %1109
        %v1111 = vsel %vm881, %v1102, 0.0
        %1112 = vadd.xlane.f32.xlu0 %v1111
        %v1113 = vpop.xlane.xlu0 %1112
        %v1114 = vsel %vm881, %v1104, 0.0
        %1115 = vadd.xlane.f32.xlu0 %v1114
        %v1116 = vpop.xlane.xlu0 %1115
        %v1117 = vrcp.pop %v1107
        %v1118 = vrcp.pop %v1110
        %v1119 = vrcp.pop %v1113
        %v1120 = vrcp.pop %v1116
        %v1121 = vmul.f32 %v1098, %v1117
        %v1122 = vmul.f32 %v1100, %v1118
        %v1123 = vmul.f32 %v1102, %v1119
        %v1124 = vmul.f32 %v1104, %v1120
        %v1125 = vpack.c.bf16 %v1121, %v1121
        %v1126 = vpack.c.bf16 %v1122, %v1122
        %v1127 = vpack.c.bf16 %v1123, %v1123
        %v1128 = vpack.c.bf16 %v1124, %v1124
        %v1130 = vsel %vm881, %v1125, 0
        %vm1132 = vcmask 1043456
        %v1134 = vsel %vm1132, %v877, 0
        %1136 = vmatprep.subr.bf16.mxu0 0
        %1137 = vmatpush1.bf16.msra.mxu0 %v1134
        %1138 = vmatprep.subr.bf16.mxu0 0
        %1139 = vmatpush1.bf16.msra.mxu0 0
        %1140 = vmatprep.subr.bf16.mxu0 0
        %1141 = vmatpush1.bf16.msra.mxu0 0
        %1142 = vmatprep.subr.bf16.mxu0 0
        %1143 = vmatpush1.bf16.msra.mxu0 0
        %1144 = vmatprep.subr.bf16.mxu0 0
        %1145 = vmatpush1.bf16.msra.mxu0 0
        %1146 = vmatprep.subr.bf16.mxu0 0
        %1147 = vmatpush1.bf16.msra.mxu0 0
        %1148 = vmatprep.subr.bf16.mxu0 0
        %1149 = vmatpush1.bf16.msra.mxu0 0
        %1150 = vmatprep.subr.bf16.mxu0 0
        %1151 = vmatpush1.bf16.msra.mxu0 0
        %1152 = vmatprep.subr.bf16.mxu0 0
        %1153 = vmatpush1.bf16.msra.mxu0 0
        %1154 = vmatprep.subr.bf16.mxu0 0
        %1155 = vmatpush1.bf16.msra.mxu0 0
        %1156 = vmatprep.subr.bf16.mxu0 0
        %1157 = vmatpush1.bf16.msra.mxu0 0
        %1158 = vmatprep.subr.bf16.mxu0 0
        %1159 = vmatpush1.bf16.msra.mxu0 0
        %1160 = vmatprep.subr.bf16.mxu0 0
        %1161 = vmatpush1.bf16.msra.mxu0 0
        %1162 = vmatprep.subr.bf16.mxu0 0
        %1163 = vmatpush1.bf16.msra.mxu0 0
        %1164 = vmatprep.subr.bf16.mxu0 0
        %1165 = vmatpush1.bf16.msra.mxu0 0
        %1166 = vmatprep.subr.bf16.mxu0 0
        %1167 = vmatpush1.bf16.msra.mxu0 0
        %1168 = vmatprep.mubr.bf16.mxu0 0
        %1169 = vmatmul.mubr.bf16.gmra.mrb[0].mxu0 %v1130
        %v1170 = vpop.f32.mrb[0].mxu0
        %v1171 = vadd.f32 0.0, %v1170
        %v1172 = vpop.f32.mrb[0].mxu0
        %v1173 = vpop.f32.mrb[0].mxu0
        %v1174 = vpop.f32.mrb[0].mxu0
        %1175 = vdwg.mxu0
        %v1177 = vsel %vm881, %v1126, 0
        %v1180 = vsel %vm1132, %v878, 0
        %1182 = vmatprep.subr.bf16.mxu0 0
        %1183 = vmatpush1.bf16.msra.mxu0 %v1180
        %1184 = vmatprep.subr.bf16.mxu0 0
        %1185 = vmatpush1.bf16.msra.mxu0 0
        %1186 = vmatprep.subr.bf16.mxu0 0
        %1187 = vmatpush1.bf16.msra.mxu0 0
        %1188 = vmatprep.subr.bf16.mxu0 0
        %1189 = vmatpush1.bf16.msra.mxu0 0
        %1190 = vmatprep.subr.bf16.mxu0 0
        %1191 = vmatpush1.bf16.msra.mxu0 0
        %1192 = vmatprep.subr.bf16.mxu0 0
        %1193 = vmatpush1.bf16.msra.mxu0 0
        %1194 = vmatprep.subr.bf16.mxu0 0
        %1195 = vmatpush1.bf16.msra.mxu0 0
        %1196 = vmatprep.subr.bf16.mxu0 0
        %1197 = vmatpush1.bf16.msra.mxu0 0
        %1198 = vmatprep.subr.bf16.mxu0 0
        %1199 = vmatpush1.bf16.msra.mxu0 0
        %1200 = vmatprep.subr.bf16.mxu0 0
        %1201 = vmatpush1.bf16.msra.mxu0 0
        %1202 = vmatprep.subr.bf16.mxu0 0
        %1203 = vmatpush1.bf16.msra.mxu0 0
        %1204 = vmatprep.subr.bf16.mxu0 0
        %1205 = vmatpush1.bf16.msra.mxu0 0
        %1206 = vmatprep.subr.bf16.mxu0 0
        %1207 = vmatpush1.bf16.msra.mxu0 0
        %1208 = vmatprep.subr.bf16.mxu0 0
        %1209 = vmatpush1.bf16.msra.mxu0 0
        %1210 = vmatprep.subr.bf16.mxu0 0
        %1211 = vmatpush1.bf16.msra.mxu0 0
        %1212 = vmatprep.subr.bf16.mxu0 0
        %1213 = vmatpush1.bf16.msra.mxu0 0
        %1214 = vmatprep.mubr.bf16.mxu0 0
        %1215 = vmatmul.mubr.bf16.gmra.mrb[0].mxu0 %v1177
        %v1216 = vpop.f32.mrb[0].mxu0
        %v1217 = vadd.f32 0.0, %v1216
        %v1218 = vpop.f32.mrb[0].mxu0
        %v1219 = vpop.f32.mrb[0].mxu0
        %v1220 = vpop.f32.mrb[0].mxu0
        %1221 = vdwg.mxu0
        %v1223 = vsel %vm881, %v1127, 0
        %v1226 = vsel %vm1132, %v879, 0
        %1228 = vmatprep.subr.bf16.mxu0 0
        %1229 = vmatpush1.bf16.msra.mxu0 %v1226
        %1230 = vmatprep.subr.bf16.mxu0 0
        %1231 = vmatpush1.bf16.msra.mxu0 0
        %1232 = vmatprep.subr.bf16.mxu0 0
        %1233 = vmatpush1.bf16.msra.mxu0 0
        %1234 = vmatprep.subr.bf16.mxu0 0
        %1235 = vmatpush1.bf16.msra.mxu0 0
        %1236 = vmatprep.subr.bf16.mxu0 0
        %1237 = vmatpush1.bf16.msra.mxu0 0
        %1238 = vmatprep.subr.bf16.mxu0 0
        %1239 = vmatpush1.bf16.msra.mxu0 0
        %1240 = vmatprep.subr.bf16.mxu0 0
        %1241 = vmatpush1.bf16.msra.mxu0 0
        %1242 = vmatprep.subr.bf16.mxu0 0
        %1243 = vmatpush1.bf16.msra.mxu0 0
        %1244 = vmatprep.subr.bf16.mxu0 0
        %1245 = vmatpush1.bf16.msra.mxu0 0
        %1246 = vmatprep.subr.bf16.mxu0 0
        %1247 = vmatpush1.bf16.msra.mxu0 0
        %1248 = vmatprep.subr.bf16.mxu0 0
        %1249 = vmatpush1.bf16.msra.mxu0 0
        %1250 = vmatprep.subr.bf16.mxu0 0
        %1251 = vmatpush1.bf16.msra.mxu0 0
        %1252 = vmatprep.subr.bf16.mxu0 0
        %1253 = vmatpush1.bf16.msra.mxu0 0
        %1254 = vmatprep.subr.bf16.mxu0 0
        %1255 = vmatpush1.bf16.msra.mxu0 0
        %1256 = vmatprep.subr.bf16.mxu0 0
        %1257 = vmatpush1.bf16.msra.mxu0 0
        %1258 = vmatprep.subr.bf16.mxu0 0
        %1259 = vmatpush1.bf16.msra.mxu0 0
        %1260 = vmatprep.mubr.bf16.mxu0 0
        %1261 = vmatmul.mubr.bf16.gmra.mrb[0].mxu0 %v1223
        %v1262 = vpop.f32.mrb[0].mxu0
        %v1263 = vadd.f32 0.0, %v1262
        %v1264 = vpop.f32.mrb[0].mxu0
        %v1265 = vpop.f32.mrb[0].mxu0
        %v1266 = vpop.f32.mrb[0].mxu0
        %1267 = vdwg.mxu0
        %v1269 = vsel %vm881, %v1128, 0
        %v1272 = vsel %vm1132, %v880, 0
        %1274 = vmatprep.subr.bf16.mxu0 0
        %1275 = vmatpush1.bf16.msra.mxu0 %v1272
        %1276 = vmatprep.subr.bf16.mxu0 0
        %1277 = vmatpush1.bf16.msra.mxu0 0
        %1278 = vmatprep.subr.bf16.mxu0 0
        %1279 = vmatpush1.bf16.msra.mxu0 0
        %1280 = vmatprep.subr.bf16.mxu0 0
        %1281 = vmatpush1.bf16.msra.mxu0 0
        %1282 = vmatprep.subr.bf16.mxu0 0
        %1283 = vmatpush1.bf16.msra.mxu0 0
        %1284 = vmatprep.subr.bf16.mxu0 0
        %1285 = vmatpush1.bf16.msra.mxu0 0
        %1286 = vmatprep.subr.bf16.mxu0 0
        %1287 = vmatpush1.bf16.msra.mxu0 0
        %1288 = vmatprep.subr.bf16.mxu0 0
        %1289 = vmatpush1.bf16.msra.mxu0 0
        %1290 = vmatprep.subr.bf16.mxu0 0
        %1291 = vmatpush1.bf16.msra.mxu0 0
        %1292 = vmatprep.subr.bf16.mxu0 0
        %1293 = vmatpush1.bf16.msra.mxu0 0
        %1294 = vmatprep.subr.bf16.mxu0 0
        %1295 = vmatpush1.bf16.msra.mxu0 0
        %1296 = vmatprep.subr.bf16.mxu0 0
        %1297 = vmatpush1.bf16.msra.mxu0 0
        %1298 = vmatprep.subr.bf16.mxu0 0
        %1299 = vmatpush1.bf16.msra.mxu0 0
        %1300 = vmatprep.subr.bf16.mxu0 0
        %1301 = vmatpush1.bf16.msra.mxu0 0
        %1302 = vmatprep.subr.bf16.mxu0 0
        %1303 = vmatpush1.bf16.msra.mxu0 0
        %1304 = vmatprep.subr.bf16.mxu0 0
        %1305 = vmatpush1.bf16.msra.mxu0 0
        %1306 = vmatprep.mubr.bf16.mxu0 0
        %1307 = vmatmul.mubr.bf16.gmra.mrb[0].mxu0 %v1269
        %v1308 = vpop.f32.mrb[0].mxu0
        %v1309 = vadd.f32 0.0, %v1308
        %v1310 = vpop.f32.mrb[0].mxu0
        %v1311 = vpop.f32.mrb[0].mxu0
        %v1312 = vpop.f32.mrb[0].mxu0
        %1313 = vdwg.mxu0
        %v1314 = vcombine.low %v1171, %v1263
        %v1315 = vcombine.high %v1171, %v1263
        %v1317 = vunpack.c.l.s4 1983009808
        %v1318 = vunpack.c.0.s8 %v1317
        %v1319 = vlaneseq
        %v1320 = vshrl.u32 %v1319, 7
        %v1321 = vsub.s32 %v1318, %v1320
        %v1322 = vrot.slane %v1314, %v1321
        %v1324 = vunpack.c.l.s4 1983009808
        %v1325 = vunpack.c.0.s8 %v1324
        %v1326 = vlaneseq
        %v1327 = vshrl.u32 %v1326, 7
        %v1328 = vsub.s32 %v1325, %v1327
        %v1329 = vrot.slane %v1315, %v1328
        %v1330 = vcombine.low %v1217, %v1309
        %v1331 = vcombine.high %v1217, %v1309
        %v1333 = vunpack.c.l.s4 1983009808
        %v1334 = vunpack.c.0.s8 %v1333
        %v1335 = vlaneseq
        %v1336 = vshrl.u32 %v1335, 7
        %v1337 = vsub.s32 %v1334, %v1336
        %v1338 = vrot.slane %v1330, %v1337
        %v1340 = vunpack.c.l.s4 1983009808
        %v1341 = vunpack.c.0.s8 %v1340
        %v1342 = vlaneseq
        %v1343 = vshrl.u32 %v1342, 7
        %v1344 = vsub.s32 %v1341, %v1343
        %v1345 = vrot.slane %v1331, %v1344
        %v1346 = vcombine.low %v1322, %v1338
        %v1347 = vcombine.high %v1322, %v1338
        %v1349 = vunpack.c.l.s4 1934713408
        %v1350 = vunpack.c.0.s8 %v1349
        %v1351 = vlaneseq
        %v1352 = vshrl.u32 %v1351, 7
        %v1353 = vsub.s32 %v1350, %v1352
        %v1354 = vrot.slane %v1346, %v1353
        %v1356 = vunpack.c.l.s4 1934713408
        %v1357 = vunpack.c.0.s8 %v1356
        %v1358 = vlaneseq
        %v1359 = vshrl.u32 %v1358, 7
        %v1360 = vsub.s32 %v1357, %v1359
        %v1361 = vrot.slane %v1347, %v1360
        %v1362 = vcombine.low %v1329, %v1345
        %v1363 = vcombine.high %v1329, %v1345
        %v1365 = vunpack.c.l.s4 1934713408
        %v1366 = vunpack.c.0.s8 %v1365
        %v1367 = vlaneseq
        %v1368 = vshrl.u32 %v1367, 7
        %v1369 = vsub.s32 %v1366, %v1368
        %v1370 = vrot.slane %v1362, %v1369
        %v1372 = vunpack.c.l.s4 1934713408
        %v1373 = vunpack.c.0.s8 %v1372
        %v1374 = vlaneseq
        %v1375 = vshrl.u32 %v1374, 7
        %v1376 = vsub.s32 %v1373, %v1375
        %v1377 = vrot.slane %v1363, %v1376
        %v1378 = vcombine.high %v1354, 0.0
        %v1379 = vcombine.high %v1361, 0.0
        %v1380 = vcombine.high %v1370, 0.0
        %v1381 = vcombine.high %v1377, 0.0
        %v1382 = vcombine.low %v1354, %v1361
        %v1384 = vunpack.c.l.s4 1983009808
        %v1385 = vunpack.c.0.s8 %v1384
        %v1386 = vlaneseq
        %v1387 = vshrl.u32 %v1386, 7
        %v1388 = vsub.s32 %v1385, %v1387
        %v1389 = vrot.slane %v1382, %v1388
        %v1390 = vcombine.low %v1378, %v1379
        %v1392 = vunpack.c.l.s4 1983009808
        %v1393 = vunpack.c.0.s8 %v1392
        %v1394 = vlaneseq
        %v1395 = vshrl.u32 %v1394, 7
        %v1396 = vsub.s32 %v1393, %v1395
        %v1397 = vrot.slane %v1390, %v1396
        %v1398 = vcombine.low %v1370, %v1377
        %v1400 = vunpack.c.l.s4 1983009808
        %v1401 = vunpack.c.0.s8 %v1400
        %v1402 = vlaneseq
        %v1403 = vshrl.u32 %v1402, 7
        %v1404 = vsub.s32 %v1401, %v1403
        %v1405 = vrot.slane %v1398, %v1404
        %v1406 = vcombine.low %v1380, %v1381
        %v1408 = vunpack.c.l.s4 1983009808
        %v1409 = vunpack.c.0.s8 %v1408
        %v1410 = vlaneseq
        %v1411 = vshrl.u32 %v1410, 7
        %v1412 = vsub.s32 %v1409, %v1411
        %v1413 = vrot.slane %v1406, %v1412
        %v1414 = vcombine.low %v1389, %v1397
        %v1415 = vcombine.high %v1389, %v1397
        %v1417 = vunpack.c.l.s4 1934713408
        %v1418 = vunpack.c.0.s8 %v1417
        %v1419 = vlaneseq
        %v1420 = vshrl.u32 %v1419, 7
        %v1421 = vsub.s32 %v1418, %v1420
        %v1422 = vrot.slane %v1414, %v1421
        %v1424 = vunpack.c.l.s4 1934713408
        %v1425 = vunpack.c.0.s8 %v1424
        %v1426 = vlaneseq
        %v1427 = vshrl.u32 %v1426, 7
        %v1428 = vsub.s32 %v1425, %v1427
        %v1429 = vrot.slane %v1415, %v1428
        %v1430 = vcombine.low %v1405, %v1413
        %v1431 = vcombine.high %v1405, %v1413
        %v1433 = vunpack.c.l.s4 1934713408
        %v1434 = vunpack.c.0.s8 %v1433
        %v1435 = vlaneseq
        %v1436 = vshrl.u32 %v1435, 7
        %v1437 = vsub.s32 %v1434, %v1436
        %v1438 = vrot.slane %v1430, %v1437
        %v1440 = vunpack.c.l.s4 1934713408
        %v1441 = vunpack.c.0.s8 %v1440
        %v1442 = vlaneseq
        %v1443 = vshrl.u32 %v1442, 7
        %v1444 = vsub.s32 %v1441, %v1443
        %v1445 = vrot.slane %v1431, %v1444
        %v1446 = vcombine.low %v1422, %v1438
        %v1447 = vcombine.high %v1422, %v1438
        %v1448 = vcombine.low %v1429, %v1445
        %v1449 = vcombine.high %v1429, %v1445
        %1451 = vrot.lane.b32.xlu0 %v1447, 8
        %v1452 = vpop.permute.xlu0 %1451
        %1455 = vrot.lane.b32.xlu0 %v1448, 16
        %v1456 = vpop.permute.xlu0 %1455
        %1459 = vrot.lane.b32.xlu0 %v1449, 24
        %v1460 = vpop.permute.xlu0 %1459
        %v1462 = vsel %vm881, %v1446, %v1452
        %vm1463 = vcmask 130048
        %v1464 = vsel %vm1463, %v1462, %v1456
        %vm1465 = vcmask 195584
        %v1466 = vsel %vm1465, %v1464, %v1460
        %vm1467 = vcmask 261120
        %1468 = vst.msk [vmem:[%s252] sm:$0xff] %vm1467, %v1466
        %s1469 = sand.u32 %s138, 1
        %s1470 = scalar_lea.sflag [#allocation7], %s1469
        %s1471 = sand.u32 %s138, 1
        %s1472 = smul.addr %s1471, 8
        %s1473 = scalar_lea.vmem [#allocation10], %s1472
        // Predicated region
        $region49: #{tpu_custom_call.1} parent=35 // pred_check
          %p1474 = pneg %p148
        $region50: #{tpu_custom_call.1} parent=35 // pred_check_branch
          %1476 = sbr.rel (%p1474) target = $region52
        $region51: #{tpu_custom_call.1} parent=35 // pred_region
          %s1478 = ssub.s32 128, 128
          %1479 = vsyncadd %s1470, %s1478
          %s1480 = sadd.s32 %s27, %s26
          %s1481 = smul.addr %s1480, 128
          %s1482 = scalar_lea.hbm %s4, %s1481
          %s1484 = sshll.u32 %s1473, 4
          %s1485 = int_to_ptr.vmem [resolvable:$true] %s1484
          %1487 = dma.vmem_to_hbm [thread:$0]  %s1485, 128, %s1482, %s1470
        $region52: #{tpu_custom_call.1} parent=35 // pred_fallthru
          _
      $region36: #{tpu_custom_call.1} parent=5 // pred_fallthru
        _
      %p1488 = scmp.le.s32.totalorder 2, %s17
      // Predicated region
      $region53: #{tpu_custom_call.1} parent=5 // pred_check
        %p1489 = pneg %p1488
      $region54: #{tpu_custom_call.1} parent=5 // pred_check_branch
        %1491 = sbr.rel (%p1489) target = $region56
      $region55: #{tpu_custom_call.1} parent=5 // pred_region
        %s1492 = ssub.s32 %s17, 2
        // Predicated region
        $region57: #{tpu_custom_call.1} parent=55 // pred_check
          %p1493 = pneg %p154
        $region58: #{tpu_custom_call.1} parent=55 // pred_check_branch
          %1495 = sbr.rel (%p1493) target = $region60
        $region59: #{tpu_custom_call.1} parent=55 // pred_region
          %s1496 = sand.u32 %s139, 1
          %s1497 = scalar_lea.sflag [#allocation7], %s1496
          %s1498 = sand.u32 %s139, 1
          %s1499 = smul.addr %s1498, 8
          %s1500 = scalar_lea.vmem [#allocation10], %s1499
          %1501 = dma.done %s1497, 128
        $region60: #{tpu_custom_call.1} parent=55 // pred_fallthru
          _
      $region56: #{tpu_custom_call.1} parent=5 // pred_fallthru
        _
    $region6: #{tpu_custom_call.1} parent=1 // loop_footer
      %s21 = sadd.s32 1, %s17
    $region7: #{tpu_custom_call.1} parent=1 // loop_footer_branch
      %16 = sbr.rel target = $region3
    $region8: #{tpu_custom_call.1} parent=1 // loop_exit
      _
    %1502 = vsyncpa [#allocation6], 1
    %s1503 = scalar_lea.sflag [#allocation6], 1
    %1504 = vsyncpa %s1503, 1
    %1505 = vsyncpa [#allocation9], 1
    %1506 = vsyncpa [#allocation7], 1
    %s1507 = scalar_lea.sflag [#allocation7], 1
    %1508 = vsyncpa %s1507, 1

</llo_original>
